<compile_context>
chip_gen: v6e
topology: v6e:2x2x1
jax: 0.10.0
libtpu: 0.0.40
codegen_flags: <defaults>
</compile_context>

<pallas_src>
import jax
import jax.numpy as jnp
from jax.experimental import pallas as pl
from jax.experimental.pallas import tpu as pltpu


def _ada_relu_kernel(thr_ref, x_ref, o_ref):
    # thr_ref: (1,) f32 scalar in SMEM; x_ref/o_ref: (tile_rows, lane_w) VMEM tiles.
    # relu(x - thr) + thr == max(x, thr); compare in the tile's native dtype (no f32 promote).
    thr = thr_ref[0].astype(x_ref.dtype)
    o_ref[...] = jnp.maximum(x_ref[...], thr)


def _default_block_bytes() -> int:
    """~4 MiB tiles on v6e/v7x, ~1 MiB elsewhere (v5e scoped VMEM default is only 16 MiB)."""
    try:
        kind = jax.devices()[0].device_kind.lower()
    except Exception:
        kind = ""
    if ("v6" in kind) or ("v7" in kind):
        return 4 << 20
    return 1 << 20


def _adaptive_relu_2d(x2d: jax.Array, thr_f32: jax.Array, block_bytes, donate_x: bool) -> jax.Array:
    """Pallas path on a lane-dense (rows, lane_w) slab. lane_w must be a multiple of 128."""
    rows, lane_w = x2d.shape
    dtype = x2d.dtype
    itemsize = jnp.dtype(dtype).itemsize
    if block_bytes is None:
        block_bytes = _default_block_bytes()

    # Target tile height: ~block_bytes per block, multiple of 32 rows (covers f32/bf16/int8
    # sublane packing) unless a single block spans the full row extent.
    target_rows = max(1, block_bytes // (lane_w * itemsize))
    if target_rows >= 32:
        target_rows = (target_rows // 32) * 32

    if rows <= target_rows:
        if rows >= 64:
            # Whole tensor would fit one block: still split into >=2 grid steps so both
            # v7x TensorCores get work on the "parallel" axis.
            half = -(-rows // 2)
            tile_rows = min(((half + 31) // 32) * 32, rows)
        else:
            tile_rows = rows                      # full-extent block (always layout-legal)
    else:
        tile_rows = min(target_rows, rows)

    grid = (pl.cdiv(rows, tile_rows),)
    nbytes = rows * lane_w * itemsize
    tile_bytes = tile_rows * lane_w * itemsize

    extra = {}
    if donate_x:
        # x2d is input index 1 (after thr); output index 0. Reuses x's HBM buffer.
        extra["input_output_aliases"] = {1: 0}

    return pl.pallas_call(
        _ada_relu_kernel,
        out_shape=jax.ShapeDtypeStruct((rows, lane_w), dtype),
        grid=grid,
        in_specs=[
            pl.BlockSpec(memory_space=pltpu.SMEM),               # thr scalar (f32)
            pl.BlockSpec((tile_rows, lane_w), lambda i: (i, 0)),  # x tile
        ],
        out_specs=pl.BlockSpec((tile_rows, lane_w), lambda i: (i, 0)),
        compiler_params=pltpu.CompilerParams(
            dimension_semantics=("parallel",),                    # shard rows across TCs
            vmem_limit_bytes=int(4 * tile_bytes + (8 << 20)),     # 2x dbl-buffered in/out + headroom
        ),
        cost_estimate=pl.CostEstimate(
            flops=rows * lane_w, transcendentals=0, bytes_accessed=2 * nbytes),
        **extra,
    )(thr_f32, x2d)


def adaptive_relu(
    x: jax.Array,
    thr,
    *,
    block_bytes=None,                  # None -> generation-aware default
    min_pallas_bytes: int = 1 << 20,   # below this, let XLA fuse the elementwise max
    force_pallas: bool = False,
    donate_x: bool = False,            # set True only if the caller can donate x's buffer
) -> jax.Array:
    """Elementwise adaptive ReLU: relu(x - thr) + thr (== max(x, thr)). Works for any shape."""
    orig_shape = x.shape
    orig_dtype = x.dtype
    n = x.size
    if n == 0:
        return x

    thr_f32 = jnp.asarray(thr, dtype=jnp.float32).reshape((1,))

    if not jnp.issubdtype(orig_dtype, jnp.floating):
        # TODO(synk): integer inputs are not routed through Pallas; mirror torch's float
        # promotion ((x - thr) promotes) with a fused XLA expression instead.
        xf = x.astype(jnp.float32)
        return jnp.maximum(xf - thr_f32[0], 0.0) + thr_f32[0]

    itemsize = jnp.dtype(orig_dtype).itemsize
    if (not force_pallas) and n * itemsize < min_pallas_bytes:
        # Tiny activations: pallas_call launch + an un-fusable read/write pass costs more
        # than letting XLA fuse the maximum into producer/consumer.
        return jnp.maximum(x, thr_f32[0].astype(orig_dtype))

    x_flat = jnp.ravel(x)

    # Pick the widest lane-dense last dim that divides n exactly (no pad / no copies).
    lane_w = None
    for cand in (8192, 4096, 2048, 1024, 512, 256, 128):
        if n % cand == 0:
            lane_w = cand
            break

    if lane_w is None:
        # Ragged size: Pallas on the 128-aligned prefix, fused jnp.maximum on the short tail.
        # (One extra write for the concat, vs. ~3x traffic for pad + slice.)
        lane_w = 128
        n_main = (n // lane_w) * lane_w
        thr_cast = thr_f32[0].astype(orig_dtype)
        tail = jnp.maximum(x_flat[n_main:], thr_cast)
        if n_main == 0:
            out_flat = tail
        else:
            head = _adaptive_relu_2d(
                x_flat[:n_main].reshape(n_main // lane_w, lane_w),
                thr_f32, block_bytes, donate_x=False)
            out_flat = jnp.concatenate([head.reshape(-1), tail])
        return out_flat.reshape(orig_shape)

    rows = n // lane_w
    out2d = _adaptive_relu_2d(x_flat.reshape(rows, lane_w), thr_f32, block_bytes, donate_x)
    return out2d.reshape(orig_shape)


class AdaptiveRelu:
    """Mirror of the PyTorch module; thr initialized deterministically to 0.0."""

    def __init__(self):
        self.thr = jnp.asarray(0.0, dtype=jnp.float32)

    def __call__(self, x):
        return adaptive_relu(x, self.thr)


if __name__ == "__main__":
    key = jax.random.PRNGKey(0)
    k_small, k_med, k_rag = jax.random.split(key, 3)

    # --- small NCHW input consistent with the module (forces the Pallas path) ---
    x = jax.random.normal(k_small, (2, 4, 16, 16), dtype=jnp.float32)

    mod = AdaptiveRelu()
    thr = jnp.asarray(0.25, dtype=jnp.float32)

    out0 = adaptive_relu(x, mod.thr, force_pallas=True)
    out1 = adaptive_relu(x, thr, force_pallas=True)
    out_fallback = adaptive_relu(x, thr)  # default path (tiny tensor -> fused jnp)
    jax.block_until_ready(out0)
    jax.block_until_ready(out1)
    jax.block_until_ready(out_fallback)

    ref0 = jnp.maximum(x - mod.thr, 0.0) + mod.thr
    ref1 = jnp.maximum(x - thr, 0.0) + thr
    assert out0.shape == x.shape and out0.dtype == x.dtype
    assert jnp.allclose(out0, ref0, atol=1e-6)
    assert jnp.allclose(out1, ref1, atol=1e-6)
    assert jnp.allclose(out_fallback, ref1, atol=1e-6)

    # --- ragged element count exercises the prefix+tail path (no pad / no slice of n) ---
    xr = jax.random.normal(k_rag, (1, 3, 7, 13), dtype=jnp.float32)  # 273 elems
    outr = adaptive_relu(xr, thr, force_pallas=True)
    jax.block_until_ready(outr)
    refr = jnp.maximum(xr - thr, 0.0) + thr
    assert outr.shape == xr.shape and outr.dtype == xr.dtype
    assert jnp.allclose(outr, refr, atol=1e-6)

    # --- moderately sized tensor exercises the big lane-dense tile path (f32 and bf16) ---
    xm = jax.random.normal(k_med, (8, 32, 64, 64), dtype=jnp.float32)   # 2M elems, 8 MiB
    outm = adaptive_relu(xm, thr)
    jax.block_until_ready(outm)
    refm = jnp.maximum(xm - thr, 0.0) + thr
    assert jnp.allclose(outm, refm, atol=1e-6)

    xm_bf16 = xm.astype(jnp.bfloat16)
    outm_bf16 = adaptive_relu(xm_bf16, thr)
    jax.block_until_ready(outm_bf16)
    refm_bf16 = jnp.maximum(xm_bf16, jnp.bfloat16(0.25))
    assert outm_bf16.dtype == jnp.bfloat16
    assert jnp.allclose(outm_bf16.astype(jnp.float32), refm_bf16.astype(jnp.float32),
                        atol=1e-2, rtol=1e-2)

    print("KERNEL_OK")
</pallas_src>

<mosaic_0001>
module attributes {stable_mosaic.version = 11 : i64} {
  func.func @_ada_relu_kernel(%arg0: i32, %arg1: memref<1xf32, #tpu.memory_space<smem>>, %arg2: memref<1x2048xf32, #tpu.memory_space<vmem>>, %arg3: memref<1x2048xf32, #tpu.memory_space<vmem>>) attributes {dimension_semantics = [#tpu.dimension_semantics<parallel>], iteration_bounds = array<i64: 1>, scalar_prefetch = 0 : i64, scratch_operands = 0 : i64, tpu.core_type = #tpu.core_type<tc>, window_params = [{transform_indices = @transform_0, window_bounds = array<i64: 1>}, {transform_indices = @transform_1, window_bounds = array<i64: 1, 2048>}, {transform_indices = @transform_2, window_bounds = array<i64: 1, 2048>}]} {
    %c0 = arith.constant 0 : index
    %0 = memref.load %arg1[%c0] : memref<1xf32, #tpu.memory_space<smem>>
    %c0_0 = arith.constant 0 : index
    %c0_1 = arith.constant 0 : index
    %1 = vector.load %arg2[%c0_0, %c0_1] : memref<1x2048xf32, #tpu.memory_space<vmem>>, vector<1x2048xf32>
    %2 = vector.broadcast %0 : f32 to vector<1x2048xf32>
    %3 = arith.maximumf %1, %2 : vector<1x2048xf32>
    %c0_2 = arith.constant 0 : index
    %c0_3 = arith.constant 0 : index
    %4 = vector.load %arg3[%c0_2, %c0_3] : memref<1x2048xf32, #tpu.memory_space<vmem>>, vector<1x2048xf32>
    tpu.vector_store %arg3[%c0_2, %c0_3], %3 {strides = array<i32>} : memref<1x2048xf32, #tpu.memory_space<vmem>>, vector<1x2048xf32>,
    return
  }
  func.func @transform_0(%arg0: i32) -> i32 {
    %c0_i32 = arith.constant 0 : i32
    %c0_i32_0 = arith.constant 0 : i32
    return %c0_i32 : i32
  }
  func.func @transform_1(%arg0: i32) -> (i32, i32) {
    %c0_i32 = arith.constant 0 : i32
    %c0_i32_0 = arith.constant 0 : i32
    return %arg0, %c0_i32 : i32, i32
  }
  func.func @transform_2(%arg0: i32) -> (i32, i32) {
    %c0_i32 = arith.constant 0 : i32
    %c0_i32_0 = arith.constant 0 : i32
    return %arg0, %c0_i32 : i32, i32
  }
}

</mosaic_0001>

<llo_original>
// kernel: tpu_custom_call.1
$region0: #{tpu_custom_call.1}
  #allocation0 [shape = 'u32[]', space=smem, size = 0x4, offset = 0x4, fixed_abs, tag = 'smem constant byte address 0x4 - core index']
  #allocation1 [shape = 'u32[144,128]{1,0:T(1,128)}', space=vmem, size = 0x12000, scoped, tag = 'internal scratch']
  #allocation2 [shape = 'f32[1]{0:T(128)S(6)}', space=smem, size = 0x200, scoped, tag = 'scoped memory for tpu_custom_call.1']
  %s0 = inlined_call_operand.<no memory space> [shape: f32[1], index: 0, kind: input, shape index: {}]
  %s1 = inlined_call_operand.hbm [shape: f32[1,2048], index: 1, kind: input, shape index: {}]
  %s2 = inlined_call_operand.hbm [shape: f32[1,2048], index: 2, kind: output, shape index: {}]
  %s3 = sld [smem:[#allocation0]]
  $region22: #{tpu_custom_call.1} parent=0
    _
  %s5 = ssub.s32 1, %s3
  %s6 = scalar_select 0, %s5, %s3
  %7 = sst [smem:[#allocation2]] %s0
  $region1: #{tpu_custom_call.1} parent=0
    #allocation3 [shape = 'u8[8192]{0}', space=vmem, size = 0x2000, scoped, tag = 'input window, operand 1, single buffered']
    #allocation4 [shape = 's32[1]{0}', space=sflag, size = 0x4, scoped, tag = 'scoped memory for tpu_custom_call.1']
    #allocation5 [shape = 's32[1]{0}', space=sflag, size = 0x4, scoped, tag = 'scoped memory for tpu_custom_call.1']
    #allocation6 [shape = 'u8[8192]{0}', space=vmem, size = 0x2000, scoped, tag = 'output window, operand 0, single buffered']
    %8 = vsyncpa [#allocation4], 0
    %9 = vsyncpa [#allocation5], 0
    // Predicated region
    $region2: #{tpu_custom_call.1} parent=1 // pred_check
      _
    $region3: #{tpu_custom_call.1} parent=1 // pred_check_branch
      %11 = sbr.rel (0) target = $region5
    $region4: #{tpu_custom_call.1} parent=1 // pred_region
      _
    $region5: #{tpu_custom_call.1} parent=1 // pred_fallthru
      _
    // Predicated region
    $region6: #{tpu_custom_call.1} parent=1 // pred_check
      _
    $region7: #{tpu_custom_call.1} parent=1 // pred_check_branch
      %13 = sbr.rel (0) target = $region9
    $region8: #{tpu_custom_call.1} parent=1 // pred_region
      %s15 = ssub.s32 256, 256
      %16 = vsyncadd [#allocation4], %s15
      %s18 = sshll.u32 [#allocation3], 4
      %s19 = int_to_ptr.vmem [resolvable:$true] %s18
      %21 = dma.hbm_to_vmem [thread:$0]  %s1, 256, %s19, [#allocation4]
    $region9: #{tpu_custom_call.1} parent=1 // pred_fallthru
      _
    // Predicated region
    $region10: #{tpu_custom_call.1} parent=1 // pred_check
      _
    $region11: #{tpu_custom_call.1} parent=1 // pred_check_branch
      %23 = sbr.rel (0) target = $region13
    $region12: #{tpu_custom_call.1} parent=1 // pred_region
      %24 = dma.done [#allocation4], 256
    $region13: #{tpu_custom_call.1} parent=1 // pred_fallthru
      _
    %s25 = sld [smem:[#allocation2]]
    %v26 = vld [vmem:[#allocation3] sm:$0xff]
    %v27 = vld [vmem:[#allocation3 + $0x8] sm:$0xff]
    %v28 = vstv %s25
    %v29 = vmax.f32 %v26, %v28
    %v30 = vmax.f32 %v27, %v28
    %31 = vst [vmem:[#allocation6] sm:$0xff] %v29
    %32 = vst [vmem:[#allocation6 + $0x8] sm:$0xff] %v30
    // Predicated region
    $region14: #{tpu_custom_call.1} parent=1 // pred_check
      _
    $region15: #{tpu_custom_call.1} parent=1 // pred_check_branch
      %34 = sbr.rel (0) target = $region17
    $region16: #{tpu_custom_call.1} parent=1 // pred_region
      %s36 = ssub.s32 256, 256
      %37 = vsyncadd [#allocation5], %s36
      %s39 = sshll.u32 [#allocation6], 4
      %s40 = int_to_ptr.vmem [resolvable:$true] %s39
      %42 = dma.vmem_to_hbm [thread:$0]  %s40, 256, %s2, [#allocation5]
    $region17: #{tpu_custom_call.1} parent=1 // pred_fallthru
      _
    // Predicated region
    $region18: #{tpu_custom_call.1} parent=1 // pred_check
      _
    $region19: #{tpu_custom_call.1} parent=1 // pred_check_branch
      %44 = sbr.rel (0) target = $region21
    $region20: #{tpu_custom_call.1} parent=1 // pred_region
      %45 = dma.done [#allocation5], 256
    $region21: #{tpu_custom_call.1} parent=1 // pred_fallthru
      _
    %46 = vsyncpa [#allocation4], 1
    %47 = vsyncpa [#allocation5], 1

</llo_original>
